<compile_context>
chip_gen: v7x
topology: tpu7x:2x2x1
jax: 0.10.0
libtpu: 0.0.40
codegen_flags: <defaults>
</compile_context>

<pallas_src>
import functools

import jax
import jax.numpy as jnp
from jax import lax
from jax.experimental import pallas as pl
from jax.experimental.pallas import tpu as pltpu


def _round_up(x, m):
    return (x + m - 1) // m * m


def _cdiv(a, b):
    return (a + b - 1) // b


def _spec(shape, index_map, *, single=False):
    """BlockSpec; grid-invariant blocks request single buffering when supported."""
    if single:
        try:
            return pl.BlockSpec(shape, index_map, pipeline_mode=pl.Buffered(1))
        except Exception:
            pass  # older Pallas without pipeline_mode / Buffered -> default
    return pl.BlockSpec(shape, index_map)


def _tpu_defaults():
    """(batch-tile cap, vmem_limit_bytes) derived from the running chip."""
    vmem_cap = None
    try:
        vmem_cap = int(pltpu.get_tpu_info().vmem_capacity_bytes)
    except Exception:
        pass
    kind = ""
    try:
        kind = jax.devices()[0].device_kind.lower()
    except Exception:
        pass
    if vmem_cap is None:
        vmem_cap = (64 if "v7" in kind else 128) * 1024 * 1024
    tb_cap = 128 if "v5" in kind else 256          # v5e MXU is 4x128^2
    vmem_limit = min(vmem_cap * 3 // 4, 96 * 1024 * 1024)
    return tb_cap, int(vmem_limit)


def _encoder_kernel(xm_ref, we_ref, be_ref, wp_ref, bp_ref, g_ref, bt_ref,
                    o_ref, *, d_real):
    # xm_ref: (TB, Dp_pad)       patch-mean-pooled features
    # we_ref: (Dp_pad, E_pad)    patch-embed ("conv") weight   (mxu dtype)
    # be_ref: (1, E_pad)         patch-embed bias              (f32)
    # wp_ref: (E_pad, D_pad)     projection weight             (mxu dtype)
    # bp_ref/g_ref/bt_ref: (1, D_pad)  proj bias, LN gamma/beta (f32)
    # o_ref : (TB, D_pad)        f32 output (padded cols are zero)
    xm = xm_ref[...]

    # base_model: pooled patch-embed conv as one MXU matmul -> (TB, E), f32 acc.
    feats = jnp.dot(xm, we_ref[...], preferred_element_type=jnp.float32)
    feats = feats + be_ref[...]

    # projection: Linear(embed_dim -> proj_dim), f32 accumulation.
    y = jnp.dot(feats.astype(wp_ref.dtype), wp_ref[...],
                preferred_element_type=jnp.float32)
    y = y + bp_ref[...]                                   # (TB, D_pad), f32

    # LayerNorm over the real proj_dim (biased variance, eps=1e-5).
    # Padded columns of y are exactly zero (wp_p / bp_p zero-padded), so:
    #   mu  = sum(y) / d_real            (no mask needed)
    #   ss  = sum((y - mu)^2) - (d_pad - d_real) * mu^2   (padded diff = -mu)
    d_pad = y.shape[-1]
    inv_d = 1.0 / d_real
    mu = jnp.sum(y, axis=-1, keepdims=True) * inv_d
    diff = y - mu
    ss = jnp.sum(diff * diff, axis=-1, keepdims=True)
    if d_pad != d_real:
        ss = ss - float(d_pad - d_real) * (mu * mu)
    var = ss * inv_d
    yn = diff * lax.rsqrt(var + 1e-5)
    # gamma/beta are zero in padded columns -> padded output columns stay 0.
    o_ref[...] = (yn * g_ref[...] + bt_ref[...]).astype(o_ref.dtype)


@functools.partial(jax.jit, static_argnames=("patch", "mxu_dtype"))
def image_encoder(x, params, *, patch, mxu_dtype=jnp.bfloat16):
    """x: (B, C, H, W) float32 (NCHW, matching the PyTorch module).

    mxu_dtype: dtype of the matmul operands (default bf16 = native MXU path on
    v5e/v6e/v7x; halves weight DMA bytes and VMEM residency).  All VPU work
    (bias add, LayerNorm) stays f32.  Use mxu_dtype=jnp.float32 for exact
    verification against an f32 reference.
    """
    B, C, H, W = x.shape
    P = patch
    if H % P != 0 or W % P != 0:
        raise ValueError("H and W must be divisible by the patch size.")

    we, be, wp, bp, gamma, beta = params
    Dp, E = we.shape
    D = wp.shape[1]

    # ---- glue: pool over patches BEFORE the patch-embed matmul --------------
    # Valid because the backbone is linear (Conv2d + global mean pool).
    # Under this jit the reshape+mean fuses into one reduction pass over x;
    # the kernel then only touches (B, Dp) + the weights.
    xm = x.reshape(B, C, H // P, P, W // P, P).mean(axis=(2, 4)).reshape(B, Dp)

    # ---- dtype-aware, megacore-friendly tiling ------------------------------
    tb_cap, vmem_limit = _tpu_defaults()
    itemsize = jnp.dtype(mxu_dtype).itemsize
    pack = 8 * 4 // itemsize                      # sublane pack: f32 8, bf16 16
    if B >= 2 * pack:
        # split the batch so the "parallel" axis has >= 2 steps (both TCs busy)
        TB = min(_round_up(_cdiv(B, 2), pack), tb_cap)
    else:
        TB = min(_round_up(max(B, 1), pack), tb_cap)
    Bp = _round_up(B, TB)
    Dpp = _round_up(Dp, 128)
    Ep = _round_up(E, 128)
    Dop = _round_up(D, 128)

    xm_p = jnp.pad(xm, ((0, Bp - B), (0, Dpp - Dp))).astype(mxu_dtype)
    we_p = jnp.pad(we, ((0, Dpp - Dp), (0, Ep - E))).astype(mxu_dtype)
    be_p = jnp.pad(be, ((0, 0), (0, Ep - E))).astype(jnp.float32)
    wp_p = jnp.pad(wp, ((0, Ep - E), (0, Dop - D))).astype(mxu_dtype)
    bp_p = jnp.pad(bp, ((0, 0), (0, Dop - D))).astype(jnp.float32)
    g_p = jnp.pad(gamma, ((0, 0), (0, Dop - D))).astype(jnp.float32)
    bt_p = jnp.pad(beta, ((0, 0), (0, Dop - D))).astype(jnp.float32)

    grid = (Bp // TB,)
    flops = 2 * Bp * Dpp * Ep + 2 * Bp * Ep * Dop
    bytes_accessed = int(
        (Bp * Dpp + Dpp * Ep + Ep * Dop) * itemsize    # xm, we, wp
        + (Ep + 3 * Dop) * 4                           # biases, gamma, beta
        + Bp * Dop * 4)                                # output

    out = pl.pallas_call(
        functools.partial(_encoder_kernel, d_real=D),
        out_shape=jax.ShapeDtypeStruct((Bp, Dop), jnp.float32),
        grid_spec=pltpu.PrefetchScalarGridSpec(
            num_scalar_prefetch=0,
            grid=grid,
            in_specs=[
                pl.BlockSpec((TB, Dpp), lambda i: (i, 0)),
                # grid-invariant -> DMA hoisted + single-buffered
                _spec((Dpp, Ep), lambda i: (0, 0), single=True),
                _spec((1, Ep), lambda i: (0, 0), single=True),
                _spec((Ep, Dop), lambda i: (0, 0), single=True),
                _spec((1, Dop), lambda i: (0, 0), single=True),
                _spec((1, Dop), lambda i: (0, 0), single=True),
                _spec((1, Dop), lambda i: (0, 0), single=True),
            ],
            out_specs=pl.BlockSpec((TB, Dop), lambda i: (i, 0)),
        ),
        compiler_params=pltpu.CompilerParams(
            dimension_semantics=("parallel",),          # shards over v7x TCs
            vmem_limit_bytes=vmem_limit),
        cost_estimate=pl.CostEstimate(
            flops=flops, transcendentals=0, bytes_accessed=bytes_accessed),
    )(xm_p, we_p, be_p, wp_p, bp_p, g_p, bt_p)

    return out[:B, :D]


def init_params(key, C, P, embed_dim, proj_dim):
    """Deterministic synthetic parameters (shapes match the PyTorch module)."""
    Dp = C * P * P
    k0, k1, k2, k3 = jax.random.split(key, 4)
    # patch-embed conv: Conv2d(C, embed_dim, P, stride=P) -> (Dp, E) matmul form
    we = jax.random.normal(k0, (Dp, embed_dim), jnp.float32) * (Dp ** -0.5)
    be = jax.random.normal(k1, (1, embed_dim), jnp.float32) * 0.02
    # projection: nn.Linear(embed_dim, proj_dim)
    wp = jax.random.normal(k2, (embed_dim, proj_dim), jnp.float32) * (
        embed_dim ** -0.5)
    bp = jax.random.normal(k3, (1, proj_dim), jnp.float32) * 0.02
    # layer_norm: nn.LayerNorm(proj_dim)
    gamma = jnp.ones((1, proj_dim), jnp.float32)
    beta = jnp.zeros((1, proj_dim), jnp.float32)
    return we, be, wp, bp, gamma, beta


def reference(x, params, patch):
    """Pure-JAX reference of the original forward pass (per-patch embed,
    mean pool, projection, LayerNorm), all in f32."""
    B, C, H, W = x.shape
    P = patch
    xp = x.reshape(B, C, H // P, P, W // P, P)
    xp = xp.transpose(0, 2, 4, 1, 3, 5).reshape(B, -1, C * P * P)
    we, be, wp, bp, gamma, beta = params
    feats = jnp.mean(jnp.einsum("bnd,de->bne", xp, we) + be[None], axis=1)
    y = feats @ wp + bp
    mu = jnp.mean(y, axis=-1, keepdims=True)
    var = jnp.mean((y - mu) ** 2, axis=-1, keepdims=True)
    return (y - mu) / jnp.sqrt(var + 1e-5) * gamma + beta


if __name__ == "__main__":
    B, C, H, W = 2, 4, 16, 16
    P = 4
    embed_dim, proj_dim = 32, 32

    key = jax.random.PRNGKey(0)
    kx, kp = jax.random.split(key)
    x = jax.random.normal(kx, (B, C, H, W), jnp.float32)
    params = init_params(kp, C, P, embed_dim, proj_dim)

    ref = reference(x, params, P)

    # Fast path: bf16 MXU operands (default) -> relaxed tolerance vs f32 ref.
    out_bf16 = jax.block_until_ready(image_encoder(x, params, patch=P))
    assert out_bf16.shape == (B, proj_dim)
    assert jnp.allclose(out_bf16, ref, atol=5e-2, rtol=5e-2)

    # Verification path: f32 operands -> exact against the f32 reference.
    out_f32 = jax.block_until_ready(
        image_encoder(x, params, patch=P, mxu_dtype=jnp.float32))
    assert out_f32.shape == (B, proj_dim)
    assert jnp.allclose(out_f32, ref, atol=1e-4, rtol=1e-4)

    print("KERNEL_OK")
</pallas_src>

<mosaic_0001>
module attributes {stable_mosaic.version = 11 : i64} {
  func.func @_encoder_kernel(%arg0: i32, %arg1: memref<16x128xbf16, #tpu.memory_space<vmem>>, %arg2: memref<128x128xbf16, #tpu.memory_space<vmem>>, %arg3: memref<1x128xf32, #tpu.memory_space<vmem>>, %arg4: memref<128x128xbf16, #tpu.memory_space<vmem>>, %arg5: memref<1x128xf32, #tpu.memory_space<vmem>>, %arg6: memref<1x128xf32, #tpu.memory_space<vmem>>, %arg7: memref<1x128xf32, #tpu.memory_space<vmem>>, %arg8: memref<16x128xf32, #tpu.memory_space<vmem>>) attributes {dimension_semantics = [#tpu.dimension_semantics<parallel>], iteration_bounds = array<i64: 1>, scalar_prefetch = 0 : i64, scratch_operands = 0 : i64, tpu.core_type = #tpu.core_type<tc>, window_params = [{transform_indices = @transform_0, window_bounds = array<i64: 16, 128>}, {pipeline_mode = #tpu.pipeline_mode<synchronous>, transform_indices = @transform_1, window_bounds = array<i64: 128, 128>}, {pipeline_mode = #tpu.pipeline_mode<synchronous>, transform_indices = @transform_2, window_bounds = array<i64: 1, 128>}, {pipeline_mode = #tpu.pipeline_mode<synchronous>, transform_indices = @transform_3, window_bounds = array<i64: 128, 128>}, {pipeline_mode = #tpu.pipeline_mode<synchronous>, transform_indices = @transform_4, window_bounds = array<i64: 1, 128>}, {pipeline_mode = #tpu.pipeline_mode<synchronous>, transform_indices = @transform_5, window_bounds = array<i64: 1, 128>}, {pipeline_mode = #tpu.pipeline_mode<synchronous>, transform_indices = @transform_6, window_bounds = array<i64: 1, 128>}, {transform_indices = @transform_7, window_bounds = array<i64: 16, 128>}]} {
    %c0 = arith.constant 0 : index
    %c0_0 = arith.constant 0 : index
    %0 = vector.load %arg1[%c0, %c0_0] : memref<16x128xbf16, #tpu.memory_space<vmem>>, vector<16x128xbf16>
    %c0_1 = arith.constant 0 : index
    %c0_2 = arith.constant 0 : index
    %1 = vector.load %arg2[%c0_1, %c0_2] : memref<128x128xbf16, #tpu.memory_space<vmem>>, vector<128x128xbf16>
    %cst = arith.constant dense<0.000000e+00> : vector<16x128xf32>
    %2 = tpu.matmul %0, %1, %cst {dimension_numbers = #tpu.dot_dimension_numbers<[1], [0], [0], [1], [0, 0, 1, 1], [], []>} : vector<16x128xbf16>, vector<128x128xbf16>, vector<16x128xf32> -> vector<16x128xf32>
    %c0_3 = arith.constant 0 : index
    %c0_4 = arith.constant 0 : index
    %3 = vector.load %arg3[%c0_3, %c0_4] : memref<1x128xf32, #tpu.memory_space<vmem>>, vector<1x128xf32>
    %4 = vector.broadcast %3 : vector<1x128xf32> to vector<16x128xf32>
    %5 = arith.addf %2, %4 : vector<16x128xf32>
    %6 = arith.truncf %5 : vector<16x128xf32> to vector<16x128xbf16>
    %c0_5 = arith.constant 0 : index
    %c0_6 = arith.constant 0 : index
    %7 = vector.load %arg4[%c0_5, %c0_6] : memref<128x128xbf16, #tpu.memory_space<vmem>>, vector<128x128xbf16>
    %cst_7 = arith.constant dense<0.000000e+00> : vector<16x128xf32>
    %8 = tpu.matmul %6, %7, %cst_7 {dimension_numbers = #tpu.dot_dimension_numbers<[1], [0], [0], [1], [0, 0, 1, 1], [], []>} : vector<16x128xbf16>, vector<128x128xbf16>, vector<16x128xf32> -> vector<16x128xf32>
    %c0_8 = arith.constant 0 : index
    %c0_9 = arith.constant 0 : index
    %9 = vector.load %arg5[%c0_8, %c0_9] : memref<1x128xf32, #tpu.memory_space<vmem>>, vector<1x128xf32>
    %10 = vector.broadcast %9 : vector<1x128xf32> to vector<16x128xf32>
    %11 = arith.addf %8, %10 : vector<16x128xf32>
    %cst_10 = arith.constant dense<0.000000e+00> : vector<16xf32>
    %12 = vector.multi_reduction <add>, %11, %cst_10 [1] : vector<16x128xf32> to vector<16xf32>
    %13 = vector.shape_cast %12 : vector<16xf32> to vector<16x1xf32>
    %cst_11 = arith.constant 3.125000e-02 : f32
    %14 = vector.broadcast %cst_11 : f32 to vector<16x1xf32>
    %15 = arith.mulf %13, %14 : vector<16x1xf32>
    %16 = vector.broadcast %15 : vector<16x1xf32> to vector<16x128xf32>
    %17 = arith.subf %11, %16 : vector<16x128xf32>
    %18 = arith.mulf %17, %17 : vector<16x128xf32>
    %cst_12 = arith.constant dense<0.000000e+00> : vector<16xf32>
    %19 = vector.multi_reduction <add>, %18, %cst_12 [1] : vector<16x128xf32> to vector<16xf32>
    %20 = vector.shape_cast %19 : vector<16xf32> to vector<16x1xf32>
    %21 = arith.mulf %15, %15 : vector<16x1xf32>
    %cst_13 = arith.constant 9.600000e+01 : f32
    %22 = vector.broadcast %cst_13 : f32 to vector<16x1xf32>
    %23 = arith.mulf %22, %21 : vector<16x1xf32>
    %24 = arith.subf %20, %23 : vector<16x1xf32>
    %cst_14 = arith.constant 3.125000e-02 : f32
    %25 = vector.broadcast %cst_14 : f32 to vector<16x1xf32>
    %26 = arith.mulf %24, %25 : vector<16x1xf32>
    %cst_15 = arith.constant 9.99999974E-6 : f32
    %27 = vector.broadcast %cst_15 : f32 to vector<16x1xf32>
    %28 = arith.addf %26, %27 : vector<16x1xf32>
    %29 = math.rsqrt %28 : vector<16x1xf32>
    %30 = vector.broadcast %29 : vector<16x1xf32> to vector<16x128xf32>
    %31 = arith.mulf %17, %30 : vector<16x128xf32>
    %c0_16 = arith.constant 0 : index
    %c0_17 = arith.constant 0 : index
    %32 = vector.load %arg6[%c0_16, %c0_17] : memref<1x128xf32, #tpu.memory_space<vmem>>, vector<1x128xf32>
    %33 = vector.broadcast %32 : vector<1x128xf32> to vector<16x128xf32>
    %34 = arith.mulf %31, %33 : vector<16x128xf32>
    %c0_18 = arith.constant 0 : index
    %c0_19 = arith.constant 0 : index
    %35 = vector.load %arg7[%c0_18, %c0_19] : memref<1x128xf32, #tpu.memory_space<vmem>>, vector<1x128xf32>
    %36 = vector.broadcast %35 : vector<1x128xf32> to vector<16x128xf32>
    %37 = arith.addf %34, %36 : vector<16x128xf32>
    %c0_20 = arith.constant 0 : index
    %c0_21 = arith.constant 0 : index
    %38 = vector.load %arg8[%c0_20, %c0_21] : memref<16x128xf32, #tpu.memory_space<vmem>>, vector<16x128xf32>
    tpu.vector_store %arg8[%c0_20, %c0_21], %37 {strides = array<i32>} : memref<16x128xf32, #tpu.memory_space<vmem>>, vector<16x128xf32>,
    return
  }
  func.func @transform_0(%arg0: i32) -> (i32, i32) {
    %c0_i32 = arith.constant 0 : i32
    %c0_i32_0 = arith.constant 0 : i32
    return %arg0, %c0_i32 : i32, i32
  }
  func.func @transform_1(%arg0: i32) -> (i32, i32) {
    %c0_i32 = arith.constant 0 : i32
    %c0_i32_0 = arith.constant 0 : i32
    %c0_i32_1 = arith.constant 0 : i32
    return %c0_i32, %c0_i32_0 : i32, i32
  }
  func.func @transform_2(%arg0: i32) -> (i32, i32) {
    %c0_i32 = arith.constant 0 : i32
    %c0_i32_0 = arith.constant 0 : i32
    %c0_i32_1 = arith.constant 0 : i32
    return %c0_i32, %c0_i32_0 : i32, i32
  }
  func.func @transform_3(%arg0: i32) -> (i32, i32) {
    %c0_i32 = arith.constant 0 : i32
    %c0_i32_0 = arith.constant 0 : i32
    %c0_i32_1 = arith.constant 0 : i32
    return %c0_i32, %c0_i32_0 : i32, i32
  }
  func.func @transform_4(%arg0: i32) -> (i32, i32) {
    %c0_i32 = arith.constant 0 : i32
    %c0_i32_0 = arith.constant 0 : i32
    %c0_i32_1 = arith.constant 0 : i32
    return %c0_i32, %c0_i32_0 : i32, i32
  }
  func.func @transform_5(%arg0: i32) -> (i32, i32) {
    %c0_i32 = arith.constant 0 : i32
    %c0_i32_0 = arith.constant 0 : i32
    %c0_i32_1 = arith.constant 0 : i32
    return %c0_i32, %c0_i32_0 : i32, i32
  }
  func.func @transform_6(%arg0: i32) -> (i32, i32) {
    %c0_i32 = arith.constant 0 : i32
    %c0_i32_0 = arith.constant 0 : i32
    %c0_i32_1 = arith.constant 0 : i32
    return %c0_i32, %c0_i32_0 : i32, i32
  }
  func.func @transform_7(%arg0: i32) -> (i32, i32) {
    %c0_i32 = arith.constant 0 : i32
    %c0_i32_0 = arith.constant 0 : i32
    return %arg0, %c0_i32 : i32, i32
  }
}

</mosaic_0001>

<llo_original>
// kernel: image_encoder.1
$region0: #{image_encoder.1}
  #allocation0 [shape = 'u32[]', space=smem, size = 0x4, offset = 0x4, fixed_abs, tag = 'smem constant byte address 0x4 - core index']
  #allocation1 [shape = 'u32[144,128]{1,0:T(1,128)}', space=vmem, size = 0x12000, scoped, tag = 'internal scratch']
  %s0 = inlined_call_operand.hbm [shape: bf16[16,128], index: 0, kind: input, shape index: {}]
  %s1 = inlined_call_operand.hbm [shape: bf16[128,128], index: 1, kind: input, shape index: {}]
  %s2 = inlined_call_operand.hbm [shape: f32[1,128], index: 2, kind: input, shape index: {}]
  %s3 = inlined_call_operand.hbm [shape: bf16[128,128], index: 3, kind: input, shape index: {}]
  %s4 = inlined_call_operand.hbm [shape: f32[1,128], index: 4, kind: input, shape index: {}]
  %s5 = inlined_call_operand.hbm [shape: f32[1,128], index: 5, kind: input, shape index: {}]
  %s6 = inlined_call_operand.hbm [shape: f32[1,128], index: 6, kind: input, shape index: {}]
  %s7 = inlined_call_operand.hbm [shape: f32[16,128], index: 7, kind: output, shape index: {}]
  %s8 = sld [smem:[#allocation0]]
  $region66: #{image_encoder.1} parent=0
    _
  %s10 = ssub.s32 1, %s8
  %s11 = scalar_select 0, %s10, %s8
  $region1: #{image_encoder.1} parent=0
    #allocation2 [shape = 'u8[4096]{0}', space=vmem, size = 0x1000, scoped, tag = 'input window, operand 0, single buffered']
    #allocation3 [shape = 's32[1]{0}', space=sflag, size = 0x4, scoped, tag = 'scoped memory for image_encoder.1']
    #allocation4 [shape = 's32[1]{0}', space=sflag, size = 0x4, scoped, tag = 'scoped memory for image_encoder.1']
    #allocation5 [shape = 'u8[32768]{0}', space=vmem, size = 0x8000, scoped, tag = 'input window, operand 1, single buffered']
    #allocation6 [shape = 's32[1]{0}', space=sflag, size = 0x4, scoped, tag = 'scoped memory for image_encoder.1']
    #allocation7 [shape = 'u8[512]{0}', space=vmem, size = 0x400, scoped, tag = 'input window, operand 2, single buffered']
    #allocation8 [shape = 'u8[32768]{0}', space=vmem, size = 0x8000, scoped, tag = 'input window, operand 3, single buffered']
    #allocation9 [shape = 's32[1]{0}', space=sflag, size = 0x4, scoped, tag = 'scoped memory for image_encoder.1']
    #allocation10 [shape = 'u8[512]{0}', space=vmem, size = 0x400, scoped, tag = 'input window, operand 4, single buffered']
    #allocation11 [shape = 'u8[512]{0}', space=vmem, size = 0x400, scoped, tag = 'input window, operand 5, single buffered']
    #allocation12 [shape = 's32[1]{0}', space=sflag, size = 0x4, scoped, tag = 'scoped memory for image_encoder.1']
    #allocation13 [shape = 'u8[512]{0}', space=vmem, size = 0x400, scoped, tag = 'input window, operand 6, single buffered']
    #allocation14 [shape = 'u8[8192]{0}', space=vmem, size = 0x2000, scoped, tag = 'output window, operand 0, single buffered']
    %12 = vsyncpa [#allocation3], 0
    %13 = vsyncpa [#allocation6], 0
    %14 = vsyncpa [#allocation9], 0
    %15 = vsyncpa [#allocation12], 0
    %16 = vsyncpa [#allocation4], 0
    // Predicated region
    $region2: #{image_encoder.1} parent=1 // pred_check
      _
    $region3: #{image_encoder.1} parent=1 // pred_check_branch
      %18 = sbr.rel (0) target = $region5
    $region4: #{image_encoder.1} parent=1 // pred_region
      %s20 = ssub.s32 128, 128
      %21 = vsyncadd [#allocation3], %s20
      %s22 = sshll.u32 [#allocation2], 4
      %s23 = int_to_ptr.vmem [resolvable:$true] %s22
      %28 = dma.hbm_to_vmem [thread:$0]  %s0, 128, %s23, [#allocation3], 64, 64, 4
    $region5: #{image_encoder.1} parent=1 // pred_fallthru
      _
    // Predicated region
    $region6: #{image_encoder.1} parent=1 // pred_check
      _
    $region7: #{image_encoder.1} parent=1 // pred_check_branch
      %30 = sbr.rel (0) target = $region9
    $region8: #{image_encoder.1} parent=1 // pred_region
      %s32 = ssub.s32 1024, 1024
      %33 = vsyncadd [#allocation6], %s32
      %s34 = sshll.u32 [#allocation5], 4
      %s35 = int_to_ptr.vmem [resolvable:$true] %s34
      %40 = dma.hbm_to_vmem [thread:$0]  %s1, 1024, %s35, [#allocation6], 64, 64, 4
    $region9: #{image_encoder.1} parent=1 // pred_fallthru
      _
    // Predicated region
    $region10: #{image_encoder.1} parent=1 // pred_check
      _
    $region11: #{image_encoder.1} parent=1 // pred_check_branch
      %42 = sbr.rel (0) target = $region13
    $region12: #{image_encoder.1} parent=1 // pred_region
      %s44 = ssub.s32 16, 16
      %45 = vsyncadd [#allocation6], %s44
      %s47 = sshll.u32 [#allocation7], 4
      %s48 = int_to_ptr.vmem [resolvable:$true] %s47
      %50 = dma.hbm_to_vmem [thread:$0]  %s2, 16, %s48, [#allocation6]
    $region13: #{image_encoder.1} parent=1 // pred_fallthru
      _
    // Predicated region
    $region14: #{image_encoder.1} parent=1 // pred_check
      _
    $region15: #{image_encoder.1} parent=1 // pred_check_branch
      %52 = sbr.rel (0) target = $region17
    $region16: #{image_encoder.1} parent=1 // pred_region
      %s54 = ssub.s32 1024, 1024
      %55 = vsyncadd [#allocation9], %s54
      %s56 = sshll.u32 [#allocation8], 4
      %s57 = int_to_ptr.vmem [resolvable:$true] %s56
      %62 = dma.hbm_to_vmem [thread:$0]  %s3, 1024, %s57, [#allocation9], 64, 64, 4
    $region17: #{image_encoder.1} parent=1 // pred_fallthru
      _
    // Predicated region
    $region18: #{image_encoder.1} parent=1 // pred_check
      _
    $region19: #{image_encoder.1} parent=1 // pred_check_branch
      %64 = sbr.rel (0) target = $region21
    $region20: #{image_encoder.1} parent=1 // pred_region
      %s66 = ssub.s32 16, 16
      %67 = vsyncadd [#allocation9], %s66
      %s69 = sshll.u32 [#allocation10], 4
      %s70 = int_to_ptr.vmem [resolvable:$true] %s69
      %72 = dma.hbm_to_vmem [thread:$0]  %s4, 16, %s70, [#allocation9]
    $region21: #{image_encoder.1} parent=1 // pred_fallthru
      _
    // Predicated region
    $region22: #{image_encoder.1} parent=1 // pred_check
      _
    $region23: #{image_encoder.1} parent=1 // pred_check_branch
      %74 = sbr.rel (0) target = $region25
    $region24: #{image_encoder.1} parent=1 // pred_region
      %s76 = ssub.s32 16, 16
      %77 = vsyncadd [#allocation12], %s76
      %s79 = sshll.u32 [#allocation11], 4
      %s80 = int_to_ptr.vmem [resolvable:$true] %s79
      %82 = dma.hbm_to_vmem [thread:$0]  %s5, 16, %s80, [#allocation12]
    $region25: #{image_encoder.1} parent=1 // pred_fallthru
      _
    // Predicated region
    $region26: #{image_encoder.1} parent=1 // pred_check
      _
    $region27: #{image_encoder.1} parent=1 // pred_check_branch
      %84 = sbr.rel (0) target = $region29
    $region28: #{image_encoder.1} parent=1 // pred_region
      %s86 = ssub.s32 16, 16
      %87 = vsyncadd [#allocation12], %s86
      %s89 = sshll.u32 [#allocation13], 4
      %s90 = int_to_ptr.vmem [resolvable:$true] %s89
      %92 = dma.hbm_to_vmem [thread:$0]  %s6, 16, %s90, [#allocation12]
    $region29: #{image_encoder.1} parent=1 // pred_fallthru
      _
    // Predicated region
    $region30: #{image_encoder.1} parent=1 // pred_check
      _
    $region31: #{image_encoder.1} parent=1 // pred_check_branch
      %94 = sbr.rel (0) target = $region33
    $region32: #{image_encoder.1} parent=1 // pred_region
      %95 = dma.done [#allocation3], 128
    $region33: #{image_encoder.1} parent=1 // pred_fallthru
      _
    // Predicated region
    $region34: #{image_encoder.1} parent=1 // pred_check
      _
    $region35: #{image_encoder.1} parent=1 // pred_check_branch
      %97 = sbr.rel (0) target = $region37
    $region36: #{image_encoder.1} parent=1 // pred_region
      %98 = dma.done [#allocation6], 1024
    $region37: #{image_encoder.1} parent=1 // pred_fallthru
      _
    // Predicated region
    $region38: #{image_encoder.1} parent=1 // pred_check
      _
    $region39: #{image_encoder.1} parent=1 // pred_check_branch
      %100 = sbr.rel (0) target = $region41
    $region40: #{image_encoder.1} parent=1 // pred_region
      %101 = dma.done [#allocation6], 16
    $region41: #{image_encoder.1} parent=1 // pred_fallthru
      _
    // Predicated region
    $region42: #{image_encoder.1} parent=1 // pred_check
      _
    $region43: #{image_encoder.1} parent=1 // pred_check_branch
      %103 = sbr.rel (0) target = $region45
    $region44: #{image_encoder.1} parent=1 // pred_region
      %104 = dma.done [#allocation9], 1024
    $region45: #{image_encoder.1} parent=1 // pred_fallthru
      _
    // Predicated region
    $region46: #{image_encoder.1} parent=1 // pred_check
      _
    $region47: #{image_encoder.1} parent=1 // pred_check_branch
      %106 = sbr.rel (0) target = $region49
    $region48: #{image_encoder.1} parent=1 // pred_region
      %107 = dma.done [#allocation9], 16
    $region49: #{image_encoder.1} parent=1 // pred_fallthru
      _
    // Predicated region
    $region50: #{image_encoder.1} parent=1 // pred_check
      _
    $region51: #{image_encoder.1} parent=1 // pred_check_branch
      %109 = sbr.rel (0) target = $region53
    $region52: #{image_encoder.1} parent=1 // pred_region
      %110 = dma.done [#allocation12], 16
    $region53: #{image_encoder.1} parent=1 // pred_fallthru
      _
    // Predicated region
    $region54: #{image_encoder.1} parent=1 // pred_check
      _
    $region55: #{image_encoder.1} parent=1 // pred_check_branch
      %112 = sbr.rel (0) target = $region57
    $region56: #{image_encoder.1} parent=1 // pred_region
      %113 = dma.done [#allocation12], 16
    $region57: #{image_encoder.1} parent=1 // pred_fallthru
      _
    %v115 = vld [vmem:[#allocation2] sm:$0xf]
    %v116 = vld [vmem:[#allocation2 + $0x4] sm:$0xf]
    %v117 = vld [vmem:[#allocation5] sm:$0xf]
    %v118 = vld [vmem:[#allocation5 + $0x4] sm:$0xf]
    %v119 = vld [vmem:[#allocation5 + $0x8] sm:$0xf]
    %v120 = vld [vmem:[#allocation5 + $0xc] sm:$0xf]
    %v121 = vld [vmem:[#allocation5 + $0x10] sm:$0xf]
    %v122 = vld [vmem:[#allocation5 + $0x14] sm:$0xf]
    %v123 = vld [vmem:[#allocation5 + $0x18] sm:$0xf]
    %v124 = vld [vmem:[#allocation5 + $0x1c] sm:$0xf]
    %v125 = vld [vmem:[#allocation5 + $0x20] sm:$0xf]
    %v126 = vld [vmem:[#allocation5 + $0x24] sm:$0xf]
    %v127 = vld [vmem:[#allocation5 + $0x28] sm:$0xf]
    %v128 = vld [vmem:[#allocation5 + $0x2c] sm:$0xf]
    %v129 = vld [vmem:[#allocation5 + $0x30] sm:$0xf]
    %v130 = vld [vmem:[#allocation5 + $0x34] sm:$0xf]
    %v131 = vld [vmem:[#allocation5 + $0x38] sm:$0xf]
    %v132 = vld [vmem:[#allocation5 + $0x3c] sm:$0xf]
    %v133 = vld [vmem:[#allocation7] sm:$0x1]
    %v135 = vlaneseq
    %v136 = vshrl.u32 %v135, 7
    %v137 = vsub.s32 0, %v136
    %v138 = vrot.slane %v133, %v137
    %v142 = vunpack.c.l.b16 %v115
    %v143 = vunpack.c.l.b16 %v116
    %v144 = vpack.c.b16 %v143, %v142
    %v162 = vunpack.c.l.b16 %v117
    %v163 = vunpack.c.l.b16 %v118
    %v164 = vunpack.c.l.b16 %v119
    %v165 = vunpack.c.l.b16 %v120
    %v166 = vunpack.c.l.b16 %v121
    %v167 = vunpack.c.l.b16 %v122
    %v168 = vunpack.c.l.b16 %v123
    %v169 = vunpack.c.l.b16 %v124
    %v170 = vunpack.c.l.b16 %v125
    %v171 = vunpack.c.l.b16 %v126
    %v172 = vunpack.c.l.b16 %v127
    %v173 = vunpack.c.l.b16 %v128
    %v174 = vunpack.c.l.b16 %v129
    %v175 = vunpack.c.l.b16 %v130
    %v176 = vunpack.c.l.b16 %v131
    %v177 = vunpack.c.l.b16 %v132
    %v178 = vpack.c.b16 %v163, %v162
    %v179 = vpack.c.b16 %v165, %v164
    %v180 = vpack.c.b16 %v167, %v166
    %v181 = vpack.c.b16 %v169, %v168
    %v182 = vpack.c.b16 %v171, %v170
    %v183 = vpack.c.b16 %v173, %v172
    %v184 = vpack.c.b16 %v175, %v174
    %v185 = vpack.c.b16 %v177, %v176
    %194 = vmatprep.subr.bf16.mxu0 0
    %195 = vmatpush1.bf16.msra.mxu0 %v178
    %196 = vmatprep.subr.bf16.mxu0 0
    %197 = vmatpush1.bf16.msra.mxu0 %v179
    %198 = vmatprep.subr.bf16.mxu0 0
    %199 = vmatpush1.bf16.msra.mxu0 %v180
    %200 = vmatprep.subr.bf16.mxu0 0
    %201 = vmatpush1.bf16.msra.mxu0 %v181
    %202 = vmatprep.subr.bf16.mxu0 0
    %203 = vmatpush1.bf16.msra.mxu0 %v182
    %204 = vmatprep.subr.bf16.mxu0 0
    %205 = vmatpush1.bf16.msra.mxu0 %v183
    %206 = vmatprep.subr.bf16.mxu0 0
    %207 = vmatpush1.bf16.msra.mxu0 %v184
    %208 = vmatprep.subr.bf16.mxu0 0
    %209 = vmatpush1.bf16.msra.mxu0 %v185
    %210 = vmatprep.subr.bf16.mxu0 0
    %211 = vmatpush1.bf16.msra.mxu0 0
    %212 = vmatprep.subr.bf16.mxu0 0
    %213 = vmatpush1.bf16.msra.mxu0 0
    %214 = vmatprep.subr.bf16.mxu0 0
    %215 = vmatpush1.bf16.msra.mxu0 0
    %216 = vmatprep.subr.bf16.mxu0 0
    %217 = vmatpush1.bf16.msra.mxu0 0
    %218 = vmatprep.subr.bf16.mxu0 0
    %219 = vmatpush1.bf16.msra.mxu0 0
    %220 = vmatprep.subr.bf16.mxu0 0
    %221 = vmatpush1.bf16.msra.mxu0 0
    %222 = vmatprep.subr.bf16.mxu0 0
    %223 = vmatpush1.bf16.msra.mxu0 0
    %224 = vmatprep.subr.bf16.mxu0 0
    %225 = vmatpush1.bf16.msra.mxu0 0
    %226 = vmatprep.mubr.bf16.mxu0 0
    %227 = vmatmul.mubr.bf16.gmra.mrb[0].mxu0 %v144
    %v228 = vpop.f32.mrb[0].mxu0
    %v229 = vadd.f32 %v138, %v228
    %v230 = vpop.f32.mrb[0].mxu0
    %v231 = vpop.f32.mrb[0].mxu0
    %v232 = vadd.f32 %v138, %v231
    %v233 = vpop.f32.mrb[0].mxu0
    %234 = vdwg.mxu0
    %v235 = vpack.c.bf16 %v232, %v229
    %v236 = vld [vmem:[#allocation8] sm:$0xf]
    %v237 = vld [vmem:[#allocation8 + $0x4] sm:$0xf]
    %v238 = vld [vmem:[#allocation8 + $0x8] sm:$0xf]
    %v239 = vld [vmem:[#allocation8 + $0xc] sm:$0xf]
    %v240 = vld [vmem:[#allocation8 + $0x10] sm:$0xf]
    %v241 = vld [vmem:[#allocation8 + $0x14] sm:$0xf]
    %v242 = vld [vmem:[#allocation8 + $0x18] sm:$0xf]
    %v243 = vld [vmem:[#allocation8 + $0x1c] sm:$0xf]
    %v244 = vld [vmem:[#allocation8 + $0x20] sm:$0xf]
    %v245 = vld [vmem:[#allocation8 + $0x24] sm:$0xf]
    %v246 = vld [vmem:[#allocation8 + $0x28] sm:$0xf]
    %v247 = vld [vmem:[#allocation8 + $0x2c] sm:$0xf]
    %v248 = vld [vmem:[#allocation8 + $0x30] sm:$0xf]
    %v249 = vld [vmem:[#allocation8 + $0x34] sm:$0xf]
    %v250 = vld [vmem:[#allocation8 + $0x38] sm:$0xf]
    %v251 = vld [vmem:[#allocation8 + $0x3c] sm:$0xf]
    %v252 = vld [vmem:[#allocation10] sm:$0x1]
    %v254 = vlaneseq
    %v255 = vshrl.u32 %v254, 7
    %v256 = vsub.s32 0, %v255
    %v257 = vrot.slane %v252, %v256
    %v275 = vunpack.c.l.b16 %v236
    %v276 = vunpack.c.l.b16 %v237
    %v277 = vunpack.c.l.b16 %v238
    %v278 = vunpack.c.l.b16 %v239
    %v279 = vunpack.c.l.b16 %v240
    %v280 = vunpack.c.l.b16 %v241
    %v281 = vunpack.c.l.b16 %v242
    %v282 = vunpack.c.l.b16 %v243
    %v283 = vunpack.c.l.b16 %v244
    %v284 = vunpack.c.l.b16 %v245
    %v285 = vunpack.c.l.b16 %v246
    %v286 = vunpack.c.l.b16 %v247
    %v287 = vunpack.c.l.b16 %v248
    %v288 = vunpack.c.l.b16 %v249
    %v289 = vunpack.c.l.b16 %v250
    %v290 = vunpack.c.l.b16 %v251
    %v291 = vpack.c.b16 %v276, %v275
    %v292 = vpack.c.b16 %v278, %v277
    %v293 = vpack.c.b16 %v280, %v279
    %v294 = vpack.c.b16 %v282, %v281
    %v295 = vpack.c.b16 %v284, %v283
    %v296 = vpack.c.b16 %v286, %v285
    %v297 = vpack.c.b16 %v288, %v287
    %v298 = vpack.c.b16 %v290, %v289
    %307 = vmatprep.subr.bf16.mxu0 0
    %308 = vmatpush1.bf16.msra.mxu0 %v291
    %309 = vmatprep.subr.bf16.mxu0 0
    %310 = vmatpush1.bf16.msra.mxu0 %v292
    %311 = vmatprep.subr.bf16.mxu0 0
    %312 = vmatpush1.bf16.msra.mxu0 %v293
    %313 = vmatprep.subr.bf16.mxu0 0
    %314 = vmatpush1.bf16.msra.mxu0 %v294
    %315 = vmatprep.subr.bf16.mxu0 0
    %316 = vmatpush1.bf16.msra.mxu0 %v295
    %317 = vmatprep.subr.bf16.mxu0 0
    %318 = vmatpush1.bf16.msra.mxu0 %v296
    %319 = vmatprep.subr.bf16.mxu0 0
    %320 = vmatpush1.bf16.msra.mxu0 %v297
    %321 = vmatprep.subr.bf16.mxu0 0
    %322 = vmatpush1.bf16.msra.mxu0 %v298
    %323 = vmatprep.subr.bf16.mxu0 0
    %324 = vmatpush1.bf16.msra.mxu0 0
    %325 = vmatprep.subr.bf16.mxu0 0
    %326 = vmatpush1.bf16.msra.mxu0 0
    %327 = vmatprep.subr.bf16.mxu0 0
    %328 = vmatpush1.bf16.msra.mxu0 0
    %329 = vmatprep.subr.bf16.mxu0 0
    %330 = vmatpush1.bf16.msra.mxu0 0
    %331 = vmatprep.subr.bf16.mxu0 0
    %332 = vmatpush1.bf16.msra.mxu0 0
    %333 = vmatprep.subr.bf16.mxu0 0
    %334 = vmatpush1.bf16.msra.mxu0 0
    %335 = vmatprep.subr.bf16.mxu0 0
    %336 = vmatpush1.bf16.msra.mxu0 0
    %337 = vmatprep.subr.bf16.mxu0 0
    %338 = vmatpush1.bf16.msra.mxu0 0
    %339 = vmatprep.mubr.bf16.mxu0 0
    %340 = vmatmul.mubr.bf16.gmra.mrb[0].mxu0 %v235
    %v341 = vpop.f32.mrb[0].mxu0
    %v342 = vadd.f32 %v257, %v341
    %v343 = vpop.f32.mrb[0].mxu0
    %v344 = vpop.f32.mrb[0].mxu0
    %v345 = vadd.f32 %v257, %v344
    %v346 = vpop.f32.mrb[0].mxu0
    %347 = vdwg.mxu0
    %348 = vadd.xlane.f32.xlu0 %v342
    %v349 = vpop.xlane.xlu0 %348
    %350 = vadd.xlane.f32.xlu0 %v345
    %v351 = vpop.xlane.xlu0 %350
    %v352 = vmul.f32 %v349, 0.03125
    %v353 = vmul.f32 %v351, 0.03125
    %v354 = vsub.f32 %v342, %v352
    %v355 = vsub.f32 %v345, %v353
    %v356 = vmul.f32 %v354, %v354
    %v357 = vmul.f32 %v355, %v355
    %358 = vadd.xlane.f32.xlu0 %v356
    %v359 = vpop.xlane.xlu0 %358
    %360 = vadd.xlane.f32.xlu0 %v357
    %v361 = vpop.xlane.xlu0 %360
    %v362 = vmul.f32 %v352, %v352
    %v363 = vmul.f32 %v353, %v353
    %v364 = vmul.f32 %v362, 96.0
    %v365 = vmul.f32 %v363, 96.0
    %v366 = vsub.f32 %v359, %v364
    %v367 = vsub.f32 %v361, %v365
    %v368 = vmul.f32 %v366, 0.03125
    %v369 = vmul.f32 %v367, 0.03125
    %v370 = vadd.f32 %v368, 1e-05
    %v371 = vadd.f32 %v369, 1e-05
    %v372 = vrsqrt.pop %v370
    %v373 = vrsqrt.pop %v371
    %v374 = vmul.f32 %v354, %v372
    %v375 = vmul.f32 %v355, %v373
    %v376 = vld [vmem:[#allocation11] sm:$0x1]
    %v378 = vlaneseq
    %v379 = vshrl.u32 %v378, 7
    %v380 = vsub.s32 0, %v379
    %v381 = vrot.slane %v376, %v380
    %v383 = vmul.f32 %v374, %v381
    %v384 = vmul.f32 %v375, %v381
    %v385 = vld [vmem:[#allocation13] sm:$0x1]
    %v387 = vlaneseq
    %v388 = vshrl.u32 %v387, 7
    %v389 = vsub.s32 0, %v388
    %v390 = vrot.slane %v385, %v389
    %v392 = vadd.f32 %v383, %v390
    %v393 = vadd.f32 %v384, %v390
    %394 = vst [vmem:[#allocation14] sm:$0xff] %v392
    %395 = vst [vmem:[#allocation14 + $0x8] sm:$0xff] %v393
    // Predicated region
    $region58: #{image_encoder.1} parent=1 // pred_check
      _
    $region59: #{image_encoder.1} parent=1 // pred_check_branch
      %397 = sbr.rel (0) target = $region61
    $region60: #{image_encoder.1} parent=1 // pred_region
      %s399 = ssub.s32 256, 256
      %400 = vsyncadd [#allocation4], %s399
      %s401 = sshll.u32 [#allocation14], 4
      %s402 = int_to_ptr.vmem [resolvable:$true] %s401
      %407 = dma.vmem_to_hbm [thread:$0]  %s402, 256, %s7, [#allocation4], 128, 128, 8
    $region61: #{image_encoder.1} parent=1 // pred_fallthru
      _
    // Predicated region
    $region62: #{image_encoder.1} parent=1 // pred_check
      _
    $region63: #{image_encoder.1} parent=1 // pred_check_branch
      %409 = sbr.rel (0) target = $region65
    $region64: #{image_encoder.1} parent=1 // pred_region
      %410 = dma.done [#allocation4], 256
    $region65: #{image_encoder.1} parent=1 // pred_fallthru
      _
    %411 = vsyncpa [#allocation3], 1
    %412 = vsyncpa [#allocation6], 1
    %413 = vsyncpa [#allocation9], 1
    %414 = vsyncpa [#allocation12], 1
    %415 = vsyncpa [#allocation4], 1

</llo_original>
